<compile_context>
chip_gen: v5e
topology: v5e:2x2
jax: 0.10.0
libtpu: 0.0.40
codegen_flags: <defaults>
</compile_context>

<pallas_src>
import functools

import jax
import jax.numpy as jnp
from jax.experimental import pallas as pl
from jax.experimental.pallas import tpu as pltpu

_LANE = 128
_VMEM_BUDGET = 20 * 1024 * 1024        # keep est. footprint well under v7x scoped 32 MiB
_VMEM_SOFT_DEFAULT = 12 * 1024 * 1024  # below this, never touch vmem_limit_bytes (v5e=16 MiB)


def _round_up(x: int, m: int) -> int:
    return ((x + m - 1) // m) * m


# --------------------------------------------------------------------------- #
# Kernel
# --------------------------------------------------------------------------- #
def _fused_mlp_kernel(x_ref, *rest, n_layers: int, act_dtype):
    """Fused MLP: all Linear(+ReLU) layers chained; intermediates stay in vregs/VMEM.

    rest = (w0, b0, w1, b1, ..., w_{L-1}, b_{L-1}, o_ref)
    Weights arrive pre-transposed (in, out) and already in the compute dtype
    (bf16 on the perf path), so the hot loop is: MXU dot (f32 accumulate) ->
    f32 bias add -> ReLU -> cast activation back to act_dtype.
    """
    o_ref = rest[-1]
    wb_refs = rest[:-1]

    h = x_ref[...]                                  # (tile_n, latent), act_dtype
    for li in range(n_layers):
        w = wb_refs[2 * li][...]                    # (in, out), act_dtype (no per-step cast)
        b = wb_refs[2 * li + 1][...]                # (1, out), f32
        y = jnp.dot(h, w, preferred_element_type=jnp.float32)   # MXU, f32 accumulate
        y = y + b                                   # f32 bias add (VPU)
        if li < n_layers - 1:
            y = jnp.maximum(y, 0.0)                 # ReLU on hidden layers only
            h = y.astype(act_dtype)                 # bf16 inter-layer activation (perf path)
        else:
            h = y                                   # keep final result in f32
    o_ref[...] = h.astype(o_ref.dtype)


# --------------------------------------------------------------------------- #
# VMEM-aware tiling + pallas_call wrapper
# --------------------------------------------------------------------------- #
def _estimate_vmem_bytes(tile_n, latent, params, out_dim, act_itemsize, out_itemsize):
    """Conservative per-kernel VMEM footprint estimate (double-buffered pipeline)."""
    # Weights/biases: BlockSpec double-buffers even constant-index-map inputs.
    wb = 2 * sum(int(w.size) * w.dtype.itemsize + int(b.size) * b.dtype.itemsize
                 for w, b in params)
    x_tile = 2 * tile_n * latent * act_itemsize
    o_tile = 2 * tile_n * out_dim * out_itemsize
    widest = max([latent] + [int(w.shape[1]) for w, _ in params])
    live = 2 * tile_n * widest * (4 + act_itemsize)   # f32 accumulator + act copy, 2x slack
    return wb + x_tile + o_tile + live


def fused_mlp(x2d, params, *, block_n=1024, out_dtype=None):
    """x2d: (N, latent); params: list of (W_t (in,out), b (1,out)) already prepared
    (lane-padded, compute dtype). Returns (N, out_dim) in out_dtype."""
    n, latent = x2d.shape
    n_layers = len(params)
    out_dim = int(params[-1][0].shape[1])
    act_dtype = params[0][0].dtype
    if x2d.dtype != act_dtype:
        x2d = x2d.astype(act_dtype)                 # plain-JAX glue, keeps kernel cast-free
    out_dtype = jnp.dtype(act_dtype if out_dtype is None else out_dtype)

    act_itemsize = jnp.dtype(act_dtype).itemsize
    out_itemsize = out_dtype.itemsize

    # Row tile: large to amortize the ~0.35 us/step overhead and reach the HBM
    # roofline; shrunk (multiple of 8) for small N, and halved while the estimated
    # VMEM footprint exceeds the budget (v7x-safe).
    tile_n = min(block_n, _round_up(max(n, 1), 8))
    while tile_n > 256 and _estimate_vmem_bytes(
            tile_n, latent, params, out_dim, act_itemsize, out_itemsize) > _VMEM_BUDGET:
        tile_n = _round_up(tile_n // 2, 8)

    n_pad = _round_up(n, tile_n)
    if n_pad != n:
        x2d = jnp.pad(x2d, ((0, n_pad - n), (0, 0)))   # zero rows: exact, sliced off below

    grid = (n_pad // tile_n,)

    in_specs = [pl.BlockSpec((tile_n, latent), lambda i: (i, 0))]
    flat_wb = []
    for (w, b) in params:
        # Constant index map -> DMA'd once, resident in VMEM across the grid.
        in_specs.append(pl.BlockSpec(tuple(w.shape), lambda i: (0, 0)))
        in_specs.append(pl.BlockSpec(tuple(b.shape), lambda i: (0, 0)))
        flat_wb.extend([w, b])

    est = _estimate_vmem_bytes(tile_n, latent, params, out_dim, act_itemsize, out_itemsize)
    cp_kwargs = dict(dimension_semantics=("parallel",))   # independent row tiles
    if est > _VMEM_SOFT_DEFAULT:
        # Raise above v5e's 16 MiB scoped default when big tiles need it, but stay
        # comfortably under v7x's 64 MiB physical VMEM.
        cp_kwargs["vmem_limit_bytes"] = int(min(max(2 * est, 32 * 1024 * 1024),
                                                56 * 1024 * 1024))

    kernel = functools.partial(_fused_mlp_kernel, n_layers=n_layers, act_dtype=act_dtype)

    out = pl.pallas_call(
        kernel,
        out_shape=jax.ShapeDtypeStruct((n_pad, out_dim), out_dtype),
        grid=grid,
        in_specs=in_specs,
        out_specs=pl.BlockSpec((tile_n, out_dim), lambda i: (i, 0)),
        compiler_params=pltpu.CompilerParams(**cp_kwargs),
    )(x2d, *flat_wb)

    return out[:n] if n_pad != n else out


# --------------------------------------------------------------------------- #
# Parameter construction / preparation
# --------------------------------------------------------------------------- #
def init_net_decoder_params(key, input_size, layers, latent, dtype=jnp.float32):
    """Deterministic PyTorch-style init. Returns list of (W_transposed (in,out), bias (1,out))
    in forward order, mirroring:
      self.layers = [Linear(latent, layers[-1])] +
                    [Linear(layers[i], layers[i-1]) for i in range(len(layers)-1, 0, -1)]
      self.last   = Linear(layers[0], input_size)
    """
    dims = [(latent, layers[-1])]
    for i in range(len(layers) - 1, 0, -1):
        dims.append((layers[i], layers[i - 1]))
    dims.append((layers[0], input_size))

    params = []
    for (fan_in, fan_out) in dims:
        key, kw, kb = jax.random.split(key, 3)
        bound = 1.0 / float(fan_in) ** 0.5
        w = jax.random.uniform(kw, (fan_out, fan_in), dtype, -bound, bound)
        b = jax.random.uniform(kb, (fan_out,), dtype, -bound, bound)
        params.append((jnp.transpose(w), b.reshape(1, fan_out)))  # store W.T, (1, out)
    return params


def prepare_decoder_params(raw_params, compute_dtype=jnp.bfloat16, lane=_LANE):
    """Host-side preprocessing for the kernel:
      * zero-pad every hidden width to a multiple of 128 lanes (exact: ReLU(0)=0 and
        zero weight rows contribute nothing) so the MXU/vregs run full-width,
      * cast weights to the compute dtype (bf16 on the perf path) -> half the DMA /
        resident VMEM and no per-step casts in the kernel,
      * keep biases in f32 (tiny) so the bias add happens on the f32 accumulator.
    """
    n_layers = len(raw_params)
    prepared = []
    prev_out_pad = 0
    for li, (w, b) in enumerate(raw_params):
        if prev_out_pad:                     # match previous layer's padded output width
            w = jnp.pad(w, ((0, prev_out_pad), (0, 0)))
        fan_out = w.shape[1]
        out_pad = ((-fan_out) % lane) if li < n_layers - 1 else 0
        if out_pad:
            w = jnp.pad(w, ((0, 0), (0, out_pad)))
            b = jnp.pad(b, ((0, 0), (0, out_pad)))
        prev_out_pad = out_pad
        prepared.append((w.astype(compute_dtype), b.astype(jnp.float32)))
    return prepared


# --------------------------------------------------------------------------- #
# Forward + reference
# --------------------------------------------------------------------------- #
def net_decoder_forward(x, params, *, latent, block_n=1024, out_dtype=None):
    """Forward pass matching NetDecoder.forward (single fused Pallas kernel).
    `params` must come from prepare_decoder_params."""
    h = x.reshape(-1, latent)                # x.view(-1, latent) -- plain-JAX glue
    return fused_mlp(h, params, block_n=block_n, out_dtype=out_dtype)


def reference_forward(x, raw_params, latent):
    """Pure-JAX f32 reference (highest precision) for correctness checking."""
    h = x.reshape(-1, latent).astype(jnp.float32)
    n_layers = len(raw_params)
    for li, (w_t, b) in enumerate(raw_params):
        h = jnp.dot(h, w_t, precision=jax.lax.Precision.HIGHEST) + b
        if li < n_layers - 1:
            h = jnp.maximum(h, 0.0)
    return h


# --------------------------------------------------------------------------- #
# Demo / self-check
# --------------------------------------------------------------------------- #
if __name__ == "__main__":
    # Small shapes: latent=32, hidden layers=[128, 64], output input_size=256.
    input_size = 256
    layers = [128, 64]
    latent = 32

    key = jax.random.PRNGKey(0)
    key, kx, kx2 = jax.random.split(key, 3)
    # Extra leading dims exercise x.view(-1, latent): (2, 4, 32) -> 8 rows.
    x = jax.random.normal(kx, (2, 4, latent), jnp.float32)
    raw_params = init_net_decoder_params(key, input_size, layers, latent)

    fwd = jax.jit(net_decoder_forward, static_argnames=("latent", "block_n", "out_dtype"))

    ref = reference_forward(x, raw_params, latent)

    # 1) f32 validation path (exact lane padding, f32 accumulate) -- tight check.
    p_f32 = prepare_decoder_params(raw_params, compute_dtype=jnp.float32)
    out_f32 = jax.block_until_ready(
        fwd(x, p_f32, latent=latent, out_dtype=jnp.float32))
    assert out_f32.shape == (8, input_size), out_f32.shape
    assert jnp.allclose(out_f32, ref, atol=1e-4, rtol=1e-4), "f32 mismatch vs reference"

    # 2) bf16 performance path (bf16 weights/activations, f32 accumulate, f32 output).
    p_bf16 = prepare_decoder_params(raw_params, compute_dtype=jnp.bfloat16)
    out_bf16 = jax.block_until_ready(
        fwd(x.astype(jnp.bfloat16), p_bf16, latent=latent, out_dtype=jnp.float32))
    assert out_bf16.shape == (8, input_size), out_bf16.shape
    assert jnp.allclose(out_bf16, ref, atol=5e-2, rtol=5e-2), "bf16 mismatch vs reference"

    # 3) Larger N: row padding + multi-step "parallel" grid, bf16 path with bf16 output
    #    (cuts the dominant output HBM traffic in half).
    x_big = jax.random.normal(kx2, (4, 100, latent), jnp.float32)
    ref_big = reference_forward(x_big, raw_params, latent)
    out_big = jax.block_until_ready(
        fwd(x_big.astype(jnp.bfloat16), p_bf16, latent=latent, out_dtype=jnp.bfloat16))
    assert out_big.shape == (400, input_size), out_big.shape
    assert out_big.dtype == jnp.bfloat16, out_big.dtype
    assert jnp.allclose(out_big.astype(jnp.float32), ref_big, atol=1e-1, rtol=1e-1), \
        "bf16-output gridded mismatch vs reference"

    print("KERNEL_OK")
</pallas_src>

<mosaic_0001>
module attributes {stable_mosaic.version = 11 : i64} {
  func.func @_fused_mlp_kernel(%arg0: i32, %arg1: memref<8x32xf32, #tpu.memory_space<vmem>>, %arg2: memref<32x128xf32, #tpu.memory_space<vmem>>, %arg3: memref<1x128xf32, #tpu.memory_space<vmem>>, %arg4: memref<128x128xf32, #tpu.memory_space<vmem>>, %arg5: memref<1x128xf32, #tpu.memory_space<vmem>>, %arg6: memref<128x256xf32, #tpu.memory_space<vmem>>, %arg7: memref<1x256xf32, #tpu.memory_space<vmem>>, %arg8: memref<8x256xf32, #tpu.memory_space<vmem>>) attributes {dimension_semantics = [#tpu.dimension_semantics<parallel>], iteration_bounds = array<i64: 1>, scalar_prefetch = 0 : i64, scratch_operands = 0 : i64, tpu.core_type = #tpu.core_type<tc>, window_params = [{transform_indices = @transform_0, window_bounds = array<i64: 8, 32>}, {pipeline_mode = #tpu.pipeline_mode<synchronous>, transform_indices = @transform_1, window_bounds = array<i64: 32, 128>}, {pipeline_mode = #tpu.pipeline_mode<synchronous>, transform_indices = @transform_2, window_bounds = array<i64: 1, 128>}, {pipeline_mode = #tpu.pipeline_mode<synchronous>, transform_indices = @transform_3, window_bounds = array<i64: 128, 128>}, {pipeline_mode = #tpu.pipeline_mode<synchronous>, transform_indices = @transform_4, window_bounds = array<i64: 1, 128>}, {pipeline_mode = #tpu.pipeline_mode<synchronous>, transform_indices = @transform_5, window_bounds = array<i64: 128, 256>}, {pipeline_mode = #tpu.pipeline_mode<synchronous>, transform_indices = @transform_6, window_bounds = array<i64: 1, 256>}, {transform_indices = @transform_7, window_bounds = array<i64: 8, 256>}]} {
    %c0 = arith.constant 0 : index
    %c0_0 = arith.constant 0 : index
    %0 = vector.load %arg1[%c0, %c0_0] : memref<8x32xf32, #tpu.memory_space<vmem>>, vector<8x32xf32>
    %c0_1 = arith.constant 0 : index
    %c0_2 = arith.constant 0 : index
    %1 = vector.load %arg2[%c0_1, %c0_2] : memref<32x128xf32, #tpu.memory_space<vmem>>, vector<32x128xf32>
    %c0_3 = arith.constant 0 : index
    %c0_4 = arith.constant 0 : index
    %2 = vector.load %arg3[%c0_3, %c0_4] : memref<1x128xf32, #tpu.memory_space<vmem>>, vector<1x128xf32>
    %cst = arith.constant dense<0.000000e+00> : vector<8x128xf32>
    %3 = tpu.matmul %0, %1, %cst {dimension_numbers = #tpu.dot_dimension_numbers<[1], [0], [0], [1], [0, 0, 1, 1], [], []>} : vector<8x32xf32>, vector<32x128xf32>, vector<8x128xf32> -> vector<8x128xf32>
    %4 = vector.broadcast %2 : vector<1x128xf32> to vector<8x128xf32>
    %5 = arith.addf %3, %4 : vector<8x128xf32>
    %cst_5 = arith.constant 0.000000e+00 : f32
    %6 = vector.broadcast %cst_5 : f32 to vector<8x128xf32>
    %7 = arith.maximumf %5, %6 : vector<8x128xf32>
    %c0_6 = arith.constant 0 : index
    %c0_7 = arith.constant 0 : index
    %8 = vector.load %arg4[%c0_6, %c0_7] : memref<128x128xf32, #tpu.memory_space<vmem>>, vector<128x128xf32>
    %c0_8 = arith.constant 0 : index
    %c0_9 = arith.constant 0 : index
    %9 = vector.load %arg5[%c0_8, %c0_9] : memref<1x128xf32, #tpu.memory_space<vmem>>, vector<1x128xf32>
    %cst_10 = arith.constant dense<0.000000e+00> : vector<8x128xf32>
    %10 = tpu.matmul %7, %8, %cst_10 {dimension_numbers = #tpu.dot_dimension_numbers<[1], [0], [0], [1], [0, 0, 1, 1], [], []>} : vector<8x128xf32>, vector<128x128xf32>, vector<8x128xf32> -> vector<8x128xf32>
    %11 = vector.broadcast %9 : vector<1x128xf32> to vector<8x128xf32>
    %12 = arith.addf %10, %11 : vector<8x128xf32>
    %cst_11 = arith.constant 0.000000e+00 : f32
    %13 = vector.broadcast %cst_11 : f32 to vector<8x128xf32>
    %14 = arith.maximumf %12, %13 : vector<8x128xf32>
    %c0_12 = arith.constant 0 : index
    %c0_13 = arith.constant 0 : index
    %15 = vector.load %arg6[%c0_12, %c0_13] : memref<128x256xf32, #tpu.memory_space<vmem>>, vector<128x256xf32>
    %c0_14 = arith.constant 0 : index
    %c0_15 = arith.constant 0 : index
    %16 = vector.load %arg7[%c0_14, %c0_15] : memref<1x256xf32, #tpu.memory_space<vmem>>, vector<1x256xf32>
    %cst_16 = arith.constant dense<0.000000e+00> : vector<8x256xf32>
    %17 = tpu.matmul %14, %15, %cst_16 {dimension_numbers = #tpu.dot_dimension_numbers<[1], [0], [0], [1], [0, 0, 1, 1], [], []>} : vector<8x128xf32>, vector<128x256xf32>, vector<8x256xf32> -> vector<8x256xf32>
    %18 = vector.broadcast %16 : vector<1x256xf32> to vector<8x256xf32>
    %19 = arith.addf %17, %18 : vector<8x256xf32>
    %c0_17 = arith.constant 0 : index
    %c0_18 = arith.constant 0 : index
    %20 = vector.load %arg8[%c0_17, %c0_18] : memref<8x256xf32, #tpu.memory_space<vmem>>, vector<8x256xf32>
    tpu.vector_store %arg8[%c0_17, %c0_18], %19 {strides = array<i32>} : memref<8x256xf32, #tpu.memory_space<vmem>>, vector<8x256xf32>,
    return
  }
  func.func @transform_0(%arg0: i32) -> (i32, i32) {
    %c0_i32 = arith.constant 0 : i32
    %c0_i32_0 = arith.constant 0 : i32
    return %arg0, %c0_i32 : i32, i32
  }
  func.func @transform_1(%arg0: i32) -> (i32, i32) {
    %c0_i32 = arith.constant 0 : i32
    %c0_i32_0 = arith.constant 0 : i32
    %c0_i32_1 = arith.constant 0 : i32
    return %c0_i32, %c0_i32_0 : i32, i32
  }
  func.func @transform_2(%arg0: i32) -> (i32, i32) {
    %c0_i32 = arith.constant 0 : i32
    %c0_i32_0 = arith.constant 0 : i32
    %c0_i32_1 = arith.constant 0 : i32
    return %c0_i32, %c0_i32_0 : i32, i32
  }
  func.func @transform_3(%arg0: i32) -> (i32, i32) {
    %c0_i32 = arith.constant 0 : i32
    %c0_i32_0 = arith.constant 0 : i32
    %c0_i32_1 = arith.constant 0 : i32
    return %c0_i32, %c0_i32_0 : i32, i32
  }
  func.func @transform_4(%arg0: i32) -> (i32, i32) {
    %c0_i32 = arith.constant 0 : i32
    %c0_i32_0 = arith.constant 0 : i32
    %c0_i32_1 = arith.constant 0 : i32
    return %c0_i32, %c0_i32_0 : i32, i32
  }
  func.func @transform_5(%arg0: i32) -> (i32, i32) {
    %c0_i32 = arith.constant 0 : i32
    %c0_i32_0 = arith.constant 0 : i32
    %c0_i32_1 = arith.constant 0 : i32
    return %c0_i32, %c0_i32_0 : i32, i32
  }
  func.func @transform_6(%arg0: i32) -> (i32, i32) {
    %c0_i32 = arith.constant 0 : i32
    %c0_i32_0 = arith.constant 0 : i32
    %c0_i32_1 = arith.constant 0 : i32
    return %c0_i32, %c0_i32_0 : i32, i32
  }
  func.func @transform_7(%arg0: i32) -> (i32, i32) {
    %c0_i32 = arith.constant 0 : i32
    %c0_i32_0 = arith.constant 0 : i32
    return %arg0, %c0_i32 : i32, i32
  }
}

</mosaic_0001>

<llo_original>
// kernel: net_decoder_forward.1
$region0: #{net_decoder_forward.1}
  #allocation0 [shape = 'u32[]', space=smem, size = 0x4, offset = 0x4, fixed_abs, tag = 'smem constant byte address 0x4 - core index']
  #allocation1 [shape = 'u32[72,128]{1,0:T(1,128)}', space=vmem, size = 0x9000, scoped, tag = 'internal scratch']
  %s0 = inlined_call_operand.hbm [shape: f32[8,32], index: 0, kind: input, shape index: {}]
  %s1 = inlined_call_operand.hbm [shape: f32[32,128], index: 1, kind: input, shape index: {}]
  %s2 = inlined_call_operand.vmem [shape: f32[1,128], index: 2, kind: input, shape index: {}]
  %s3 = inlined_call_operand.hbm [shape: f32[128,128], index: 3, kind: input, shape index: {}]
  %s4 = inlined_call_operand.vmem [shape: f32[1,128], index: 4, kind: input, shape index: {}]
  %s5 = inlined_call_operand.hbm [shape: f32[128,256], index: 5, kind: input, shape index: {}]
  %s6 = inlined_call_operand.vmem [shape: f32[1,256], index: 6, kind: input, shape index: {}]
  %s7 = inlined_call_operand.hbm [shape: f32[8,256], index: 7, kind: output, shape index: {}]
  %s8 = sld [smem:[#allocation0]]
  $region54: #{net_decoder_forward.1} parent=0
    _
  %s10 = ssub.s32 1, %s8
  %s11 = scalar_select 0, %s10, %s8
  $region1: #{net_decoder_forward.1} parent=0
    #allocation2 [shape = 'u8[4096]{0}', space=vmem, size = 0x1000, scoped, tag = 'input window, operand 0, single buffered']
    #allocation3 [shape = 's32[1]{0}', space=sflag, size = 0x4, scoped, tag = 'scoped memory for net_decoder_forward.1']
    #allocation4 [shape = 's32[1]{0}', space=sflag, size = 0x4, scoped, tag = 'scoped memory for net_decoder_forward.1']
    #allocation5 [shape = 'u8[16384]{0}', space=vmem, size = 0x4000, scoped, tag = 'input window, operand 1, single buffered']
    #allocation6 [shape = 's32[1]{0}', space=sflag, size = 0x4, scoped, tag = 'scoped memory for net_decoder_forward.1']
    #allocation7 [shape = 'u8[65536]{0}', space=vmem, size = 0x10000, scoped, tag = 'input window, operand 3, single buffered']
    #allocation8 [shape = 'u8[131072]{0}', space=vmem, size = 0x20000, scoped, tag = 'input window, operand 5, single buffered']
    #allocation9 [shape = 's32[1]{0}', space=sflag, size = 0x4, scoped, tag = 'scoped memory for net_decoder_forward.1']
    #allocation10 [shape = 'u8[8192]{0}', space=vmem, size = 0x2000, scoped, tag = 'output window, operand 0, single buffered']
    %12 = vsyncpa [#allocation3], 0
    %13 = vsyncpa [#allocation6], 0
    %14 = vsyncpa [#allocation9], 0
    %15 = vsyncpa [#allocation4], 0
    // Predicated region
    $region2: #{net_decoder_forward.1} parent=1 // pred_check
      _
    $region3: #{net_decoder_forward.1} parent=1 // pred_check_branch
      %17 = sbr.rel (0) target = $region5
    $region4: #{net_decoder_forward.1} parent=1 // pred_region
      %19 = vsyncadd [#allocation3], 0
      %s21 = sshll.u32 %s0, 4
      %s22 = int_to_ptr.hbm [resolvable:$true] %s21
      %s23 = sshll.u32 [#allocation2], 4
      %s24 = int_to_ptr.vmem [resolvable:$true] %s23
      %26 = dma.hbm_to_vmem [thread:$0]  %s22, 128, %s24, [#allocation3]
    $region5: #{net_decoder_forward.1} parent=1 // pred_fallthru
      _
    // Predicated region
    $region6: #{net_decoder_forward.1} parent=1 // pred_check
      _
    $region7: #{net_decoder_forward.1} parent=1 // pred_check_branch
      %28 = sbr.rel (0) target = $region9
    $region8: #{net_decoder_forward.1} parent=1 // pred_region
      %30 = vsyncadd [#allocation6], 0
      %s31 = sshll.u32 %s1, 4
      %s32 = int_to_ptr.hbm [resolvable:$true] %s31
      %s33 = sshll.u32 [#allocation5], 4
      %s34 = int_to_ptr.vmem [resolvable:$true] %s33
      %39 = dma.hbm_to_vmem [thread:$0]  %s32, 512, %s34, [#allocation6], 128, 128, 8
    $region9: #{net_decoder_forward.1} parent=1 // pred_fallthru
      _
    // Predicated region
    $region10: #{net_decoder_forward.1} parent=1 // pred_check
      _
    $region11: #{net_decoder_forward.1} parent=1 // pred_check_branch
      %41 = sbr.rel (0) target = $region13
    $region12: #{net_decoder_forward.1} parent=1 // pred_region
      _
    $region13: #{net_decoder_forward.1} parent=1 // pred_fallthru
      _
    // Predicated region
    $region14: #{net_decoder_forward.1} parent=1 // pred_check
      _
    $region15: #{net_decoder_forward.1} parent=1 // pred_check_branch
      %43 = sbr.rel (0) target = $region17
    $region16: #{net_decoder_forward.1} parent=1 // pred_region
      %45 = vsyncadd [#allocation6], 0
      %s46 = sshll.u32 %s3, 4
      %s47 = int_to_ptr.hbm [resolvable:$true] %s46
      %s48 = sshll.u32 [#allocation7], 4
      %s49 = int_to_ptr.vmem [resolvable:$true] %s48
      %54 = dma.hbm_to_vmem [thread:$0]  %s47, 2048, %s49, [#allocation6], 128, 128, 8
    $region17: #{net_decoder_forward.1} parent=1 // pred_fallthru
      _
    // Predicated region
    $region18: #{net_decoder_forward.1} parent=1 // pred_check
      _
    $region19: #{net_decoder_forward.1} parent=1 // pred_check_branch
      %56 = sbr.rel (0) target = $region21
    $region20: #{net_decoder_forward.1} parent=1 // pred_region
      _
    $region21: #{net_decoder_forward.1} parent=1 // pred_fallthru
      _
    // Predicated region
    $region22: #{net_decoder_forward.1} parent=1 // pred_check
      _
    $region23: #{net_decoder_forward.1} parent=1 // pred_check_branch
      %58 = sbr.rel (0) target = $region25
    $region24: #{net_decoder_forward.1} parent=1 // pred_region
      %60 = vsyncadd [#allocation9], 0
      %s61 = sshll.u32 %s5, 4
      %s62 = int_to_ptr.hbm [resolvable:$true] %s61
      %s63 = sshll.u32 [#allocation8], 4
      %s64 = int_to_ptr.vmem [resolvable:$true] %s63
      %69 = dma.hbm_to_vmem [thread:$0]  %s62, 4096, %s64, [#allocation9], 256, 256, 16
    $region25: #{net_decoder_forward.1} parent=1 // pred_fallthru
      _
    // Predicated region
    $region26: #{net_decoder_forward.1} parent=1 // pred_check
      _
    $region27: #{net_decoder_forward.1} parent=1 // pred_check_branch
      %71 = sbr.rel (0) target = $region29
    $region28: #{net_decoder_forward.1} parent=1 // pred_region
      _
    $region29: #{net_decoder_forward.1} parent=1 // pred_fallthru
      _
    // Predicated region
    $region30: #{net_decoder_forward.1} parent=1 // pred_check
      _
    $region31: #{net_decoder_forward.1} parent=1 // pred_check_branch
      %73 = sbr.rel (0) target = $region33
    $region32: #{net_decoder_forward.1} parent=1 // pred_region
      %75 = dma.done [#allocation3], 128
    $region33: #{net_decoder_forward.1} parent=1 // pred_fallthru
      _
    // Predicated region
    $region34: #{net_decoder_forward.1} parent=1 // pred_check
      _
    $region35: #{net_decoder_forward.1} parent=1 // pred_check_branch
      %77 = sbr.rel (0) target = $region37
    $region36: #{net_decoder_forward.1} parent=1 // pred_region
      %79 = dma.done [#allocation6], 512
    $region37: #{net_decoder_forward.1} parent=1 // pred_fallthru
      _
    // Predicated region
    $region38: #{net_decoder_forward.1} parent=1 // pred_check
      _
    $region39: #{net_decoder_forward.1} parent=1 // pred_check_branch
      %81 = sbr.rel (0) target = $region41
    $region40: #{net_decoder_forward.1} parent=1 // pred_region
      %83 = dma.done [#allocation6], 2048
    $region41: #{net_decoder_forward.1} parent=1 // pred_fallthru
      _
    // Predicated region
    $region42: #{net_decoder_forward.1} parent=1 // pred_check
      _
    $region43: #{net_decoder_forward.1} parent=1 // pred_check_branch
      %85 = sbr.rel (0) target = $region45
    $region44: #{net_decoder_forward.1} parent=1 // pred_region
      %87 = dma.done [#allocation9], 4096
    $region45: #{net_decoder_forward.1} parent=1 // pred_fallthru
      _
    %v88 = vld [vmem:[#allocation2] sm:$0xff]
    %v89 = vld [vmem:[#allocation5] sm:$0xff]
    %v90 = vld [vmem:[#allocation5 + $0x8] sm:$0xff]
    %v91 = vld [vmem:[#allocation5 + $0x10] sm:$0xff]
    %v92 = vld [vmem:[#allocation5 + $0x18] sm:$0xff]
    %v93 = vld [vmem:[%s2] sm:$0x1]
    %v95 = vperm.slane %v93, 0
    %vm97 = vcmask 261120
    %v99 = vsel %vm97, %v88, 0
    %101 = vmatpush.msra.mxu0 0.0
    %102 = vmatpush.msra.mxu0 0.0
    %103 = vmatpush.msra.mxu0 0.0
    %104 = vmatpush.msra.mxu0 0.0
    %105 = vmatpush.msra.mxu0 0.0
    %106 = vmatpush.msra.mxu0 0.0
    %107 = vmatpush.msra.mxu0 0.0
    %108 = vmatpush.msra.mxu0 0.0
    %109 = vmatpush.msra.mxu0 0.0
    %110 = vmatpush.msra.mxu0 0.0
    %111 = vmatpush.msra.mxu0 0.0
    %112 = vmatpush.msra.mxu0 0.0
    %113 = vmatpush.msra.mxu0 %v92
    %114 = vmatpush.msra.mxu0 %v91
    %115 = vmatpush.msra.mxu0 %v90
    %116 = vmatpush.msra.mxu0 %v89
    %117 = vmatmul.f32.gmra.mxu0 %v99
    %v118 = vpop.f32.mrf.mxu0
    %v119 = vadd.f32 %v95, %v118
    %120 = vdwg.mxu0
    %v121 = vmax.f32 %v119, 0.0
    %v122 = vld [vmem:[#allocation7] sm:$0xff]
    %v123 = vld [vmem:[#allocation7 + $0x8] sm:$0xff]
    %v124 = vld [vmem:[#allocation7 + $0x10] sm:$0xff]
    %v125 = vld [vmem:[#allocation7 + $0x18] sm:$0xff]
    %v126 = vld [vmem:[#allocation7 + $0x20] sm:$0xff]
    %v127 = vld [vmem:[#allocation7 + $0x28] sm:$0xff]
    %v128 = vld [vmem:[#allocation7 + $0x30] sm:$0xff]
    %v129 = vld [vmem:[#allocation7 + $0x38] sm:$0xff]
    %v130 = vld [vmem:[#allocation7 + $0x40] sm:$0xff]
    %v131 = vld [vmem:[#allocation7 + $0x48] sm:$0xff]
    %v132 = vld [vmem:[#allocation7 + $0x50] sm:$0xff]
    %v133 = vld [vmem:[#allocation7 + $0x58] sm:$0xff]
    %v134 = vld [vmem:[#allocation7 + $0x60] sm:$0xff]
    %v135 = vld [vmem:[#allocation7 + $0x68] sm:$0xff]
    %v136 = vld [vmem:[#allocation7 + $0x70] sm:$0xff]
    %v137 = vld [vmem:[#allocation7 + $0x78] sm:$0xff]
    %v138 = vld [vmem:[%s4] sm:$0x1]
    %v140 = vperm.slane %v138, 0
    %142 = vmatpush.msra.mxu0 %v137
    %143 = vmatpush.msra.mxu0 %v136
    %144 = vmatpush.msra.mxu0 %v135
    %145 = vmatpush.msra.mxu0 %v134
    %146 = vmatpush.msra.mxu0 %v133
    %147 = vmatpush.msra.mxu0 %v132
    %148 = vmatpush.msra.mxu0 %v131
    %149 = vmatpush.msra.mxu0 %v130
    %150 = vmatpush.msra.mxu0 %v129
    %151 = vmatpush.msra.mxu0 %v128
    %152 = vmatpush.msra.mxu0 %v127
    %153 = vmatpush.msra.mxu0 %v126
    %154 = vmatpush.msra.mxu0 %v125
    %155 = vmatpush.msra.mxu0 %v124
    %156 = vmatpush.msra.mxu0 %v123
    %157 = vmatpush.msra.mxu0 %v122
    %158 = vmatmul.f32.gmra.mxu0 %v121
    %v159 = vpop.f32.mrf.mxu0
    %v160 = vadd.f32 %v140, %v159
    %161 = vdwg.mxu0
    %v162 = vmax.f32 %v160, 0.0
    %v163 = vld [vmem:[#allocation8] sm:$0xff]
    %v164 = vld [vmem:[#allocation8 + $0x8] sm:$0xff]
    %v165 = vld [vmem:[#allocation8 + $0x10] sm:$0xff]
    %v166 = vld [vmem:[#allocation8 + $0x18] sm:$0xff]
    %v167 = vld [vmem:[#allocation8 + $0x20] sm:$0xff]
    %v168 = vld [vmem:[#allocation8 + $0x28] sm:$0xff]
    %v169 = vld [vmem:[#allocation8 + $0x30] sm:$0xff]
    %v170 = vld [vmem:[#allocation8 + $0x38] sm:$0xff]
    %v171 = vld [vmem:[#allocation8 + $0x40] sm:$0xff]
    %v172 = vld [vmem:[#allocation8 + $0x48] sm:$0xff]
    %v173 = vld [vmem:[#allocation8 + $0x50] sm:$0xff]
    %v174 = vld [vmem:[#allocation8 + $0x58] sm:$0xff]
    %v175 = vld [vmem:[#allocation8 + $0x60] sm:$0xff]
    %v176 = vld [vmem:[#allocation8 + $0x68] sm:$0xff]
    %v177 = vld [vmem:[#allocation8 + $0x70] sm:$0xff]
    %v178 = vld [vmem:[#allocation8 + $0x78] sm:$0xff]
    %v179 = vld [vmem:[#allocation8 + $0x80] sm:$0xff]
    %v180 = vld [vmem:[#allocation8 + $0x88] sm:$0xff]
    %v181 = vld [vmem:[#allocation8 + $0x90] sm:$0xff]
    %v182 = vld [vmem:[#allocation8 + $0x98] sm:$0xff]
    %v183 = vld [vmem:[#allocation8 + $0xa0] sm:$0xff]
    %v184 = vld [vmem:[#allocation8 + $0xa8] sm:$0xff]
    %v185 = vld [vmem:[#allocation8 + $0xb0] sm:$0xff]
    %v186 = vld [vmem:[#allocation8 + $0xb8] sm:$0xff]
    %v187 = vld [vmem:[#allocation8 + $0xc0] sm:$0xff]
    %v188 = vld [vmem:[#allocation8 + $0xc8] sm:$0xff]
    %v189 = vld [vmem:[#allocation8 + $0xd0] sm:$0xff]
    %v190 = vld [vmem:[#allocation8 + $0xd8] sm:$0xff]
    %v191 = vld [vmem:[#allocation8 + $0xe0] sm:$0xff]
    %v192 = vld [vmem:[#allocation8 + $0xe8] sm:$0xff]
    %v193 = vld [vmem:[#allocation8 + $0xf0] sm:$0xff]
    %v194 = vld [vmem:[#allocation8 + $0xf8] sm:$0xff]
    %v195 = vld [vmem:[%s6] sm:$0x3]
    %v197 = vperm.slane %v195, 0
    %v198 = vperm.slane %v195, 1
    %201 = vmatpush.msra.mxu0 %v193
    %202 = vmatpush.msra.mxu0 %v191
    %203 = vmatpush.msra.mxu0 %v189
    %204 = vmatpush.msra.mxu0 %v187
    %205 = vmatpush.msra.mxu0 %v185
    %206 = vmatpush.msra.mxu0 %v183
    %207 = vmatpush.msra.mxu0 %v181
    %208 = vmatpush.msra.mxu0 %v179
    %209 = vmatpush.msra.mxu0 %v177
    %210 = vmatpush.msra.mxu0 %v175
    %211 = vmatpush.msra.mxu0 %v173
    %212 = vmatpush.msra.mxu0 %v171
    %213 = vmatpush.msra.mxu0 %v169
    %214 = vmatpush.msra.mxu0 %v167
    %215 = vmatpush.msra.mxu0 %v165
    %216 = vmatpush.msra.mxu0 %v163
    %217 = vmatmul.f32.gmra.mxu0 %v162
    %v218 = vpop.f32.mrf.mxu0
    %v219 = vadd.f32 %v197, %v218
    %220 = vdwg.mxu0
    %221 = vmatpush.msra.mxu0 %v194
    %222 = vmatpush.msra.mxu0 %v192
    %223 = vmatpush.msra.mxu0 %v190
    %224 = vmatpush.msra.mxu0 %v188
    %225 = vmatpush.msra.mxu0 %v186
    %226 = vmatpush.msra.mxu0 %v184
    %227 = vmatpush.msra.mxu0 %v182
    %228 = vmatpush.msra.mxu0 %v180
    %229 = vmatpush.msra.mxu0 %v178
    %230 = vmatpush.msra.mxu0 %v176
    %231 = vmatpush.msra.mxu0 %v174
    %232 = vmatpush.msra.mxu0 %v172
    %233 = vmatpush.msra.mxu0 %v170
    %234 = vmatpush.msra.mxu0 %v168
    %235 = vmatpush.msra.mxu0 %v166
    %236 = vmatpush.msra.mxu0 %v164
    %237 = vmatmul.f32.gmra.mxu0 %v162
    %v238 = vpop.f32.mrf.mxu0
    %v239 = vadd.f32 %v198, %v238
    %240 = vdwg.mxu0
    %241 = vst [vmem:[#allocation10] sm:$0xff] %v219
    %242 = vst [vmem:[#allocation10 + $0x8] sm:$0xff] %v239
    // Predicated region
    $region46: #{net_decoder_forward.1} parent=1 // pred_check
      _
    $region47: #{net_decoder_forward.1} parent=1 // pred_check_branch
      %244 = sbr.rel (0) target = $region49
    $region48: #{net_decoder_forward.1} parent=1 // pred_region
      %246 = vsyncadd [#allocation4], 0
      %s248 = sshll.u32 [#allocation10], 4
      %s249 = int_to_ptr.vmem [resolvable:$true] %s248
      %s250 = sshll.u32 %s7, 4
      %s251 = int_to_ptr.hbm [resolvable:$true] %s250
      %253 = dma.vmem_to_hbm [thread:$0]  %s249, 256, %s251, [#allocation4]
    $region49: #{net_decoder_forward.1} parent=1 // pred_fallthru
      _
    // Predicated region
    $region50: #{net_decoder_forward.1} parent=1 // pred_check
      _
    $region51: #{net_decoder_forward.1} parent=1 // pred_check_branch
      %255 = sbr.rel (0) target = $region53
    $region52: #{net_decoder_forward.1} parent=1 // pred_region
      %257 = dma.done [#allocation4], 256
    $region53: #{net_decoder_forward.1} parent=1 // pred_fallthru
      _
    %258 = vsyncpa [#allocation3], 1
    %259 = vsyncpa [#allocation6], 1
    %260 = vsyncpa [#allocation9], 1
    %261 = vsyncpa [#allocation4], 1

</llo_original>
